<compile_context>
chip_gen: v5e
topology: v5e:2x2
jax: 0.10.0
libtpu: 0.0.40
codegen_flags: <defaults>
</compile_context>

<pallas_src>
import functools
import math

import jax
import jax.numpy as jnp
from jax.experimental import pallas as pl
from jax.experimental.pallas import tpu as pltpu


def make_pe_table(d_model: int, max_len: int = 5000) -> jnp.ndarray:
    """Build the sinusoidal PE table exactly as in the PyTorch __init__."""
    position = jnp.arange(0, max_len, dtype=jnp.float32)[:, None]            # (max_len, 1)
    div_term = jnp.exp(
        jnp.arange(0, d_model, 2, dtype=jnp.float32) * -(math.log(10000.0) / d_model)
    )                                                                         # (d_model/2,)
    pe = jnp.zeros((max_len, d_model), dtype=jnp.float32)
    pe = pe.at[:, 0::2].set(jnp.sin(position * div_term))
    pe = pe.at[:, 1::2].set(jnp.cos(position * div_term))
    return pe                                                                 # (max_len, d_model)


# ----------------------------- kernels --------------------------------------


def _pe_add_kernel(x_ref, pe_ref, o_ref):
    # x block: (tR, tC); pe block: (1, tC) -> cheap sublane broadcast add.
    o_ref[...] = x_ref[...] + pe_ref[...]


def _pe_add_dropout_kernel(seed_ref, x_ref, pe_ref, o_ref, *,
                           p_drop: float, row_tile: int, col_tile: int, n_cols: int):
    y = x_ref[...] + pe_ref[...]                       # (tR, tC)

    # Stateless counter-based PRNG: per-element global index mixed with the
    # seed through a murmur3-style 32-bit finalizer. Pure VPU integer ops, so
    # it lowers on real TPUs and in interpret mode alike.
    r0 = (pl.program_id(0) * row_tile).astype(jnp.uint32)
    c0 = (pl.program_id(1) * col_tile).astype(jnp.uint32)
    rows = jax.lax.broadcasted_iota(jnp.int32, y.shape, 0).astype(jnp.uint32)
    cols = jax.lax.broadcasted_iota(jnp.int32, y.shape, 1).astype(jnp.uint32)
    idx = (r0 + rows) * jnp.uint32(n_cols) + (c0 + cols)

    seed_u = seed_ref[0].astype(jnp.uint32)
    h = idx ^ (seed_u * jnp.uint32(0x9E3779B1))
    h = h ^ (h >> 16)
    h = h * jnp.uint32(0x85EBCA6B)
    h = h ^ (h >> 13)
    h = h * jnp.uint32(0xC2B2AE35)
    h = h ^ (h >> 16)

    # Integer threshold compare: drop iff h < p * 2^32 (no float conversion).
    threshold = jnp.uint32(min(int(round(p_drop * 4294967296.0)), 4294967295))
    keep = h >= threshold
    scale = jnp.asarray(1.0 / (1.0 - p_drop), dtype=y.dtype)
    o_ref[...] = jnp.where(keep, y * scale, jnp.zeros_like(y))


# ----------------------------- wrapper ---------------------------------------


def _choose_tiles(B: int, N: int, itemsize: int, target_bytes: int = 2 << 20):
    """Pick (row_tile, col_tile) giving ~2 MiB lane-dense blocks."""
    row_tile = B if B < 8 else 8                      # multiple of 8 or full B
    budget = max(128, (target_bytes // max(1, row_tile * itemsize)) // 128 * 128)
    col_tile = N if N <= budget else budget           # multiple of 128 or full N
    return row_tile, col_tile


def positional_encoding_forward(x, pe_table, *, p_drop=0.5, training=False, seed=0):
    """x: (B, S, D). Returns dropout(x + pe[:S]) with PyTorch semantics."""
    B, S, D = x.shape
    N = S * D

    # Lane-dense view: last dim becomes S*D (free reshape: trailing-dim merge).
    x2 = x.reshape(B, N)
    pe2 = pe_table[:S].reshape(1, N).astype(x.dtype)

    itemsize = jnp.dtype(x.dtype).itemsize
    row_tile, col_tile = _choose_tiles(B, N, itemsize)
    grid = (pl.cdiv(B, row_tile), pl.cdiv(N, col_tile))

    cparams = pltpu.CompilerParams(
        dimension_semantics=("parallel", "parallel"),  # both TCs on v7x
    )
    out_shape = jax.ShapeDtypeStruct((B, N), x.dtype)

    use_dropout = bool(training) and float(p_drop) > 0.0

    if not use_dropout:
        xo_spec = pl.BlockSpec((row_tile, col_tile), lambda r, c: (r, c))
        pe_spec = pl.BlockSpec((1, col_tile), lambda r, c: (0, c))
        out2 = pl.pallas_call(
            _pe_add_kernel,
            out_shape=out_shape,
            grid_spec=pltpu.PrefetchScalarGridSpec(
                num_scalar_prefetch=0,
                grid=grid,
                in_specs=[xo_spec, pe_spec],
                out_specs=xo_spec,
            ),
            compiler_params=cparams,
        )(x2, pe2)
    else:
        seed_arr = jnp.asarray([seed], dtype=jnp.int32)
        kernel = functools.partial(
            _pe_add_dropout_kernel,
            p_drop=float(p_drop), row_tile=row_tile, col_tile=col_tile, n_cols=N,
        )
        xo_spec = pl.BlockSpec((row_tile, col_tile), lambda r, c, seed_ref: (r, c))
        pe_spec = pl.BlockSpec((1, col_tile), lambda r, c, seed_ref: (0, c))
        out2 = pl.pallas_call(
            kernel,
            out_shape=out_shape,
            grid_spec=pltpu.PrefetchScalarGridSpec(
                num_scalar_prefetch=1,          # seed -> SMEM (only when needed)
                grid=grid,
                in_specs=[xo_spec, pe_spec],
                out_specs=xo_spec,
            ),
            compiler_params=cparams,
        )(seed_arr, x2, pe2)

    return out2.reshape(B, S, D)


# ----------------------------- demo / check ----------------------------------

if __name__ == "__main__":
    # Small shapes consistent with the module's forward: (batch, seq, d_model)
    B, S, D = 2, 8, 32
    key = jax.random.PRNGKey(0)
    x = jax.random.normal(key, (B, S, D), dtype=jnp.float32)

    pe_table = make_pe_table(d_model=D, max_len=5000)
    ref = x + pe_table[:S][None]

    # Eval mode (dropout = identity): deterministic, check against reference.
    out_eval = jax.block_until_ready(
        positional_encoding_forward(x, pe_table, p_drop=0.5, training=False))
    assert out_eval.shape == (B, S, D)
    assert jnp.allclose(out_eval, ref, atol=1e-6, rtol=1e-6), "eval-mode mismatch"

    # Training mode (dropout p=0.5, in-kernel stateless hash PRNG).
    out_train = jax.block_until_ready(
        positional_encoding_forward(x, pe_table, p_drop=0.5, training=True, seed=123))
    assert out_train.shape == (B, S, D)
    # Every element is either dropped (0) or (x + pe) scaled by 1/(1-p) = 2.
    scaled = ref * 2.0
    ok = jnp.isclose(out_train, 0.0, atol=1e-6) | jnp.isclose(
        out_train, scaled, atol=1e-5, rtol=1e-5)
    assert bool(jnp.all(ok)), "training-mode dropout values inconsistent"

    print("KERNEL_OK")
</pallas_src>

<mosaic_0001>
module attributes {stable_mosaic.version = 11 : i64} {
  func.func @_pe_add_kernel(%arg0: i32, %arg1: i32, %arg2: memref<2x256xf32, #tpu.memory_space<vmem>>, %arg3: memref<1x256xf32, #tpu.memory_space<vmem>>, %arg4: memref<2x256xf32, #tpu.memory_space<vmem>>) attributes {dimension_semantics = [#tpu.dimension_semantics<parallel>, #tpu.dimension_semantics<parallel>], iteration_bounds = array<i64: 1, 1>, scalar_prefetch = 0 : i64, scratch_operands = 0 : i64, tpu.core_type = #tpu.core_type<tc>, window_params = [{transform_indices = @transform_0, window_bounds = array<i64: 2, 256>}, {transform_indices = @transform_1, window_bounds = array<i64: 1, 256>}, {transform_indices = @transform_2, window_bounds = array<i64: 2, 256>}]} {
    %c0 = arith.constant 0 : index
    %c0_0 = arith.constant 0 : index
    %0 = vector.load %arg2[%c0, %c0_0] : memref<2x256xf32, #tpu.memory_space<vmem>>, vector<2x256xf32>
    %c0_1 = arith.constant 0 : index
    %c0_2 = arith.constant 0 : index
    %1 = vector.load %arg3[%c0_1, %c0_2] : memref<1x256xf32, #tpu.memory_space<vmem>>, vector<1x256xf32>
    %2 = vector.broadcast %1 : vector<1x256xf32> to vector<2x256xf32>
    %3 = arith.addf %0, %2 : vector<2x256xf32>
    %c0_3 = arith.constant 0 : index
    %c0_4 = arith.constant 0 : index
    %4 = vector.load %arg4[%c0_3, %c0_4] : memref<2x256xf32, #tpu.memory_space<vmem>>, vector<2x256xf32>
    tpu.vector_store %arg4[%c0_3, %c0_4], %3 {strides = array<i32>} : memref<2x256xf32, #tpu.memory_space<vmem>>, vector<2x256xf32>,
    return
  }
  func.func @transform_0(%arg0: i32, %arg1: i32) -> (i32, i32) {
    %c0_i32 = arith.constant 0 : i32
    return %arg0, %arg1 : i32, i32
  }
  func.func @transform_1(%arg0: i32, %arg1: i32) -> (i32, i32) {
    %c0_i32 = arith.constant 0 : i32
    %c0_i32_0 = arith.constant 0 : i32
    return %c0_i32, %arg1 : i32, i32
  }
  func.func @transform_2(%arg0: i32, %arg1: i32) -> (i32, i32) {
    %c0_i32 = arith.constant 0 : i32
    return %arg0, %arg1 : i32, i32
  }
}

</mosaic_0001>

<llo_original>
// kernel: tpu_custom_call.1
$region0: #{tpu_custom_call.1}
  #allocation0 [shape = 'u32[]', space=smem, size = 0x4, offset = 0x4, fixed_abs, tag = 'smem constant byte address 0x4 - core index']
  #allocation1 [shape = 'u32[72,128]{1,0:T(1,128)}', space=vmem, size = 0x9000, scoped, tag = 'internal scratch']
  %s0 = inlined_call_operand.hbm [shape: f32[2,256], index: 0, kind: input, shape index: {}]
  %s1 = inlined_call_operand.hbm [shape: f32[1,256], index: 1, kind: input, shape index: {}]
  %s2 = inlined_call_operand.hbm [shape: f32[2,256], index: 2, kind: output, shape index: {}]
  %s3 = sld [smem:[#allocation0]]
  $region26: #{tpu_custom_call.1} parent=0
    _
  %s5 = ssub.s32 1, %s3
  %s6 = scalar_select 0, %s5, %s3
  $region1: #{tpu_custom_call.1} parent=0
    #allocation2 [shape = 'u8[2048]{0}', space=vmem, size = 0x800, scoped, tag = 'input window, operand 0, single buffered']
    #allocation3 [shape = 's32[1]{0}', space=sflag, size = 0x4, scoped, tag = 'scoped memory for tpu_custom_call.1']
    #allocation4 [shape = 's32[1]{0}', space=sflag, size = 0x4, scoped, tag = 'scoped memory for tpu_custom_call.1']
    #allocation5 [shape = 'u8[1024]{0}', space=vmem, size = 0x400, scoped, tag = 'input window, operand 1, single buffered']
    #allocation6 [shape = 's32[1]{0}', space=sflag, size = 0x4, scoped, tag = 'scoped memory for tpu_custom_call.1']
    #allocation7 [shape = 'u8[2048]{0}', space=vmem, size = 0x800, scoped, tag = 'output window, operand 0, single buffered']
    %7 = vsyncpa [#allocation3], 0
    %8 = vsyncpa [#allocation6], 0
    %9 = vsyncpa [#allocation4], 0
    // Predicated region
    $region2: #{tpu_custom_call.1} parent=1 // pred_check
      _
    $region3: #{tpu_custom_call.1} parent=1 // pred_check_branch
      %11 = sbr.rel (0) target = $region5
    $region4: #{tpu_custom_call.1} parent=1 // pred_region
      %13 = vsyncadd [#allocation3], 0
      %s15 = sshll.u32 %s0, 4
      %s16 = int_to_ptr.hbm [resolvable:$true] %s15
      %s17 = sshll.u32 [#allocation2], 4
      %s18 = int_to_ptr.vmem [resolvable:$true] %s17
      %20 = dma.hbm_to_vmem [thread:$0]  %s16, 64, %s18, [#allocation3]
    $region5: #{tpu_custom_call.1} parent=1 // pred_fallthru
      _
    // Predicated region
    $region6: #{tpu_custom_call.1} parent=1 // pred_check
      _
    $region7: #{tpu_custom_call.1} parent=1 // pred_check_branch
      %22 = sbr.rel (0) target = $region9
    $region8: #{tpu_custom_call.1} parent=1 // pred_region
      %24 = vsyncadd [#allocation6], 0
      %s26 = sshll.u32 %s1, 4
      %s27 = int_to_ptr.hbm [resolvable:$true] %s26
      %s28 = sshll.u32 [#allocation5], 4
      %s29 = int_to_ptr.vmem [resolvable:$true] %s28
      %31 = dma.hbm_to_vmem [thread:$0]  %s27, 32, %s29, [#allocation6]
    $region9: #{tpu_custom_call.1} parent=1 // pred_fallthru
      _
    // Predicated region
    $region10: #{tpu_custom_call.1} parent=1 // pred_check
      _
    $region11: #{tpu_custom_call.1} parent=1 // pred_check_branch
      %33 = sbr.rel (0) target = $region13
    $region12: #{tpu_custom_call.1} parent=1 // pred_region
      %35 = dma.done [#allocation3], 64
    $region13: #{tpu_custom_call.1} parent=1 // pred_fallthru
      _
    // Predicated region
    $region14: #{tpu_custom_call.1} parent=1 // pred_check
      _
    $region15: #{tpu_custom_call.1} parent=1 // pred_check_branch
      %37 = sbr.rel (0) target = $region17
    $region16: #{tpu_custom_call.1} parent=1 // pred_region
      %39 = dma.done [#allocation6], 32
    $region17: #{tpu_custom_call.1} parent=1 // pred_fallthru
      _
    %v40 = vld [vmem:[#allocation2] sm:$0xf]
    %v41 = vld [vmem:[#allocation5] sm:$0x3]
    %v43 = vperm.slane %v41, 0
    %v44 = vperm.slane %v41, 1
    %v45 = vrot.slane %v44, 6
    %vm46 = vcmask 1041408
    %v47 = vsel %vm46, %v43, %v45
    %v49 = vadd.f32 %v40, %v47
    %50 = vst [vmem:[#allocation7] sm:$0xf] %v49
    // Predicated region
    $region18: #{tpu_custom_call.1} parent=1 // pred_check
      _
    $region19: #{tpu_custom_call.1} parent=1 // pred_check_branch
      %52 = sbr.rel (0) target = $region21
    $region20: #{tpu_custom_call.1} parent=1 // pred_region
      %54 = vsyncadd [#allocation4], 0
      %s56 = sshll.u32 [#allocation7], 4
      %s57 = int_to_ptr.vmem [resolvable:$true] %s56
      %s58 = sshll.u32 %s2, 4
      %s59 = int_to_ptr.hbm [resolvable:$true] %s58
      %61 = dma.vmem_to_hbm [thread:$0]  %s57, 64, %s59, [#allocation4]
    $region21: #{tpu_custom_call.1} parent=1 // pred_fallthru
      _
    // Predicated region
    $region22: #{tpu_custom_call.1} parent=1 // pred_check
      _
    $region23: #{tpu_custom_call.1} parent=1 // pred_check_branch
      %63 = sbr.rel (0) target = $region25
    $region24: #{tpu_custom_call.1} parent=1 // pred_region
      %65 = dma.done [#allocation4], 64
    $region25: #{tpu_custom_call.1} parent=1 // pred_fallthru
      _
    %66 = vsyncpa [#allocation3], 1
    %67 = vsyncpa [#allocation6], 1
    %68 = vsyncpa [#allocation4], 1

</llo_original>
